<compile_context>
chip_gen: v6e
topology: v6e:2x2x1
jax: 0.10.0
libtpu: 0.0.40
codegen_flags: <defaults>
</compile_context>

<pallas_src>
import functools

import numpy as np
import jax
import jax.numpy as jnp
from jax.experimental import pallas as pl
from jax.experimental.pallas import tpu as pltpu

_SUBLANE_BF16 = 16  # bf16 sublane-tile height -> per-tap col stride alignment


def _round_up(x, m):
    return (x + m - 1) // m * m


@functools.lru_cache(maxsize=None)
def _roll_matches_jnp() -> bool:
    """Probe pltpu.roll's rotate convention once so tap shifts get the right sign."""
    n = 256

    def kern(x_ref, o_ref):
        o_ref[...] = pltpu.roll(x_ref[...], 3, axis=1)

    x = jnp.arange(n, dtype=jnp.float32).reshape(1, n)
    y = pl.pallas_call(kern, out_shape=jax.ShapeDtypeStruct((1, n), jnp.float32))(x)
    return bool(jnp.array_equal(y, jnp.roll(x, 3, axis=1)))


@functools.lru_cache(maxsize=None)
def _tap_geometry(D, H, W, KD, KH, KW):
    """Per-tap (flat offset, (dd,dh,dw)); asserts the roll-and-mask scheme is valid."""
    dhw = D * H * W
    p = np.arange(dhw)
    d, h, w = p // (H * W), (p // W) % H, p % W
    taps = []
    for kd in range(KD):
        for kh in range(KH):
            for kw in range(KW):
                dd, dh, dw = kd - KD // 2, kh - KH // 2, kw - KW // 2
                off = dd * H * W + dh * W + dw
                valid = ((d + dd >= 0) & (d + dd < D) &
                         (h + dh >= 0) & (h + dh < H) &
                         (w + dw >= 0) & (w + dw < W))
                # Wrap-safety: every position whose rolled read wraps around the
                # flattened volume must be spatially invalid (mask == 0).
                assert abs(off) < dhw, "kernel tap offset exceeds volume size"
                wraps = (p + off < 0) | (p + off >= dhw)
                assert not np.any(wraps & valid), "wrapped tap position not masked"
                taps.append((int(off), (dd, dh, dw)))
    return tuple(taps)


def _conv_block(src, w_ref, b_ref, col_ref, valid_rows, *, tap_meta, is_norm, eps):
    """One Conv3d('same', stride 1) + optional InstanceNorm3d + ReLU.

    src:        (Cp, DHW) f32, spatial on lanes, channels zero-padded to 16
    w_ref:      (Cout_p, T*Cp) bf16, tap-major contraction axis (K blocks 16-aligned)
    b_ref:      (Cout_p, 1) f32 or None (None when InstanceNorm cancels it)
    col_ref:    (>= T*Cp, DHW) bf16 VMEM scratch (im2col operand)
    valid_rows: {(axis, delta): (1, DHW) bool} precomputed boundary-validity rows
    """
    cp, dhw = src.shape
    n_taps = len(tap_meta)

    # im2col build: per tap, XLU lane-roll + boundary mask, stored straight to bf16
    # at a 16-row-aligned offset (full-tile, unmasked stores).
    for t, (shift, deltas) in enumerate(tap_meta):
        shifted = src if shift == 0 else pltpu.roll(src, shift, axis=1)
        mask = None
        for ax, delta in enumerate(deltas):
            if delta != 0:
                row = valid_rows[(ax, delta)]
                mask = row if mask is None else jnp.logical_and(mask, row)
        if mask is not None:
            shifted = jnp.where(mask, shifted, jnp.zeros_like(shifted))
        col_ref[pl.ds(t * cp, cp), :] = shifted.astype(jnp.bfloat16)

    col = col_ref[pl.ds(0, n_taps * cp), :]
    # Single MXU contraction: (Cout_p, T*Cp) @ (T*Cp, DHW); bf16 in, f32 accumulate.
    y = jnp.dot(w_ref[...], col, preferred_element_type=jnp.float32)
    if b_ref is not None:                       # only when InstanceNorm is off
        y = y + b_ref[...]

    if is_norm:
        # Two-pass mean / centered variance (no E[x^2]-E[x]^2 cancellation), clamped.
        inv_n = 1.0 / dhw
        mean = jnp.sum(y, axis=1, keepdims=True) * inv_n
        c = y - mean
        var = jnp.maximum(jnp.sum(c * c, axis=1, keepdims=True) * inv_n, 0.0)
        y = c * jax.lax.rsqrt(var + eps)

    return jnp.maximum(y, 0.0)                  # ReLU


def _unet_conv3_kernel(*refs, tap_meta, dims, out_ch, is_norm, eps):
    """Both conv blocks fused; the intermediate activation stays on-chip."""
    if is_norm:
        coords_ref, x_ref, w1_ref, w2_ref, o_ref, col_ref = refs
        b1_ref = b2_ref = None
    else:
        coords_ref, x_ref, w1_ref, b1_ref, w2_ref, b2_ref, o_ref, col_ref = refs

    # Boundary-validity rows ('same' padding) computed once from the (3, DHW)
    # coordinate table and shared by both conv blocks and all taps.
    deltas_per_axis = [sorted({deltas[ax] for _, deltas in tap_meta if deltas[ax] != 0})
                       for ax in range(3)]
    valid_rows = {}
    for ax, size in enumerate(dims):
        row = coords_ref[ax:ax + 1, :]                       # (1, DHW) int32
        for delta in deltas_per_axis[ax]:
            if delta > 0:
                valid_rows[(ax, delta)] = row < (size - delta)
            else:
                valid_rows[(ax, delta)] = row >= (-delta)

    x = x_ref[...].astype(jnp.float32)                       # (Cin_p, DHW)
    y1 = _conv_block(x, w1_ref, b1_ref, col_ref, valid_rows,
                     tap_meta=tap_meta, is_norm=is_norm, eps=eps)
    y2 = _conv_block(y1, w2_ref, b2_ref, col_ref, valid_rows,
                     tap_meta=tap_meta, is_norm=is_norm, eps=eps)
    o_ref[...] = y2[:out_ch, :].astype(o_ref.dtype)


def unet_conv3_forward(x_ncdhw, params, is_batchnorm=True, eps=1e-5):
    """UNetConv3.forward (PyTorch NCDHW in / NCDHW out). stride=1, 'same' padding."""
    N, Cin, D, H, W = x_ncdhw.shape
    Cout, _, KD, KH, KW = params["w1"].shape
    dhw = D * H * W
    n_taps = KD * KH * KW
    is_norm = bool(is_batchnorm)

    taps = _tap_geometry(D, H, W, KD, KH, KW)
    roll_like_jnp = _roll_matches_jnp()
    tap_meta = tuple(
        ((((-off) % dhw) if roll_like_jnp else (off % dhw)), deltas)
        for off, deltas in taps)

    cp_in = _round_up(Cin, _SUBLANE_BF16)
    cp_out = _round_up(Cout, _SUBLANE_BF16)

    # Tiny (3, DHW) coordinate table (d, h, w per flat position) replaces the old
    # (27, DHW) f32 mask table.
    p = np.arange(dhw, dtype=np.int64)
    coords = jnp.asarray(np.stack([p // (H * W), (p // W) % H, p % W]).astype(np.int32))

    # Weights: (O, I, KD, KH, KW) -> (Cout_p, T*Cin_p) bf16, tap-major K axis, zero
    # padded so each tap's K block starts on a 16-row (bf16) sublane tile.
    def w2d(w, cpo, cpi):
        co, ci = int(w.shape[0]), int(w.shape[1])
        w_t = jnp.transpose(w, (2, 3, 4, 0, 1)).reshape(n_taps, co, ci)
        w_p = jnp.zeros((n_taps, cpo, cpi), w.dtype).at[:, :co, :ci].set(w_t)
        return jnp.transpose(w_p, (1, 0, 2)).reshape(cpo, n_taps * cpi).astype(jnp.bfloat16)

    w1 = w2d(params["w1"], cp_out, cp_in)
    w2 = w2d(params["w2"], cp_out, cp_out)

    x_flat = x_ncdhw.reshape(N, Cin, dhw)        # contiguous reshape: free
    if cp_in != Cin:                             # channel pad -> aligned col stores
        x_flat = jnp.pad(x_flat, ((0, 0), (0, cp_in - Cin), (0, 0)))

    if not is_norm:
        def b2d(b, cpo):
            return jnp.zeros((cpo, 1), jnp.float32).at[:b.shape[0], 0].set(
                b.astype(jnp.float32))
        b1 = b2d(params["b1"], cp_out)
        b2 = b2d(params["b2"], cp_out)

    kern = functools.partial(_unet_conv3_kernel, tap_meta=tap_meta, dims=(D, H, W),
                             out_ch=Cout, is_norm=is_norm, eps=float(eps))

    itemsize = jnp.dtype(x_ncdhw.dtype).itemsize
    col_rows = n_taps * max(cp_in, cp_out)
    # Generous VMEM estimate (double-buffer everything) -> explicit scoped limit.
    est = (col_rows * dhw * 2
           + 2 * (cp_in * dhw * itemsize + Cout * dhw * itemsize)
           + 2 * 2 * (int(w1.size) + int(w2.size))
           + 2 * 4 * int(coords.size)
           + (0 if is_norm else 2 * 4 * 2 * cp_out))
    vmem_limit = int(min(48 * 2**20, max(16 * 2**20, 2 * est)))

    flops = 2 * N * dhw * n_taps * (cp_in * cp_out + cp_out * cp_out)
    bytes_accessed = (int(x_flat.size) * itemsize + N * Cout * dhw * itemsize
                      + 2 * (int(w1.size) + int(w2.size)) + 4 * int(coords.size))

    def run(single_buffer):
        def shared_spec(shape):
            idx = lambda n: tuple(0 for _ in shape)
            if single_buffer:
                # grid-invariant operand: no need for double buffering
                return pl.BlockSpec(shape, idx, pipeline_mode=pl.Buffered(1))
            return pl.BlockSpec(shape, idx)

        in_specs = [shared_spec((3, dhw)),
                    pl.BlockSpec((None, cp_in, dhw), lambda n: (n, 0, 0)),
                    shared_spec((cp_out, n_taps * cp_in))]
        args = [coords, x_flat, w1]
        if not is_norm:
            in_specs.append(shared_spec((cp_out, 1)))
            args.append(b1)
        in_specs.append(shared_spec((cp_out, n_taps * cp_out)))
        args.append(w2)
        if not is_norm:
            in_specs.append(shared_spec((cp_out, 1)))
            args.append(b2)

        return pl.pallas_call(
            kern,
            out_shape=jax.ShapeDtypeStruct((N, Cout, dhw), x_ncdhw.dtype),
            grid=(N,),
            in_specs=in_specs,
            out_specs=pl.BlockSpec((None, Cout, dhw), lambda n: (n, 0, 0)),
            scratch_shapes=[pltpu.VMEM((col_rows, dhw), jnp.bfloat16)],
            compiler_params=pltpu.CompilerParams(
                dimension_semantics=("parallel",),
                vmem_limit_bytes=vmem_limit),
            cost_estimate=pl.CostEstimate(flops=flops,
                                          transcendentals=2 * N * cp_out,
                                          bytes_accessed=bytes_accessed),
        )(*args)

    try:
        out = run(single_buffer=True)
    except Exception:
        # pipeline_mode=pl.Buffered(1) not supported on this JAX -> default buffering.
        out = run(single_buffer=False)

    return out.reshape(N, Cout, D, H, W)


def unet_conv3_reference(x_ncdhw, params, is_batchnorm=True, eps=1e-5):
    """Pure-JAX f32 reference (lax conv) for correctness checking."""
    def block(x, w, b):
        y = jax.lax.conv_general_dilated(
            x, w, window_strides=(1, 1, 1),
            padding=((1, 1), (1, 1), (1, 1)),
            dimension_numbers=("NCDHW", "OIDHW", "NCDHW"),
            precision=jax.lax.Precision.HIGHEST)
        y = y + b[None, :, None, None, None]
        if is_batchnorm:
            mean = y.mean(axis=(2, 3, 4), keepdims=True)
            var = ((y - mean) ** 2).mean(axis=(2, 3, 4), keepdims=True)
            y = (y - mean) * jax.lax.rsqrt(var + eps)
        return jnp.maximum(y, 0.0)

    y = block(x_ncdhw, params["w1"], params["b1"])
    return block(y, params["w2"], params["b2"])


def init_params(key, in_size, out_size, ksize=(3, 3, 3)):
    """Deterministic synthetic parameters (shapes match nn.Conv3d weights)."""
    k1, k2, k3, k4 = jax.random.split(key, 4)
    fan1 = in_size * ksize[0] * ksize[1] * ksize[2]
    fan2 = out_size * ksize[0] * ksize[1] * ksize[2]
    w1 = jax.random.normal(k1, (out_size, in_size) + ksize, jnp.float32) / jnp.sqrt(fan1)
    b1 = 0.01 * jax.random.normal(k2, (out_size,), jnp.float32)
    w2 = jax.random.normal(k3, (out_size, out_size) + ksize, jnp.float32) / jnp.sqrt(fan2)
    b2 = 0.01 * jax.random.normal(k4, (out_size,), jnp.float32)
    return dict(w1=w1, b1=b1, w2=w2, b2=b2)


if __name__ == "__main__":
    key = jax.random.PRNGKey(0)
    kx, kp = jax.random.split(key)

    # Small shapes consistent with the module: batch=2, in_size=4, out_size=8,
    # spatial volume 8x8x8.  Input follows PyTorch Conv3d convention NCDHW.
    N, Cin, Cout, D, H, W = 2, 4, 8, 8, 8, 8
    x = jax.random.normal(kx, (N, Cin, D, H, W), jnp.float32)
    params = init_params(kp, Cin, Cout)

    for is_bn in (True, False):
        out = jax.block_until_ready(unet_conv3_forward(x, params, is_batchnorm=is_bn))
        assert out.shape == (N, Cout, D, H, W), out.shape
        ref = jax.block_until_ready(unet_conv3_reference(x, params, is_batchnorm=is_bn))
        # Tolerance reflects bf16 MXU operands (f32 accumulation) vs the f32 reference.
        if not jnp.allclose(out, ref, atol=5e-2, rtol=2e-2):
            raise ValueError(
                f"mismatch vs reference (is_batchnorm={is_bn}): "
                f"max abs diff {jnp.max(jnp.abs(out - ref))}")

    print("KERNEL_OK")
</pallas_src>

<mosaic_0001>
module attributes {stable_mosaic.version = 11 : i64} {
  func.func @kern(%arg0: memref<1x256xf32, #tpu.memory_space<vmem>>, %arg1: memref<1x256xf32, #tpu.memory_space<vmem>>) attributes {dimension_semantics = [], scalar_prefetch = 0 : i64, scratch_operands = 0 : i64, tpu.core_type = #tpu.core_type<tc>} {
    %c0 = arith.constant 0 : index
    %c0_0 = arith.constant 0 : index
    %0 = vector.load %arg0[%c0, %c0_0] : memref<1x256xf32, #tpu.memory_space<vmem>>, vector<1x256xf32>
    %c3_i32 = arith.constant 3 : i32
    %1 = tpu.dynamic_rotate %0 by %c3_i32 dim 1 : vector<1x256xf32>, i32 -> vector<1x256xf32>
    %c0_1 = arith.constant 0 : index
    %c0_2 = arith.constant 0 : index
    %2 = vector.load %arg1[%c0_1, %c0_2] : memref<1x256xf32, #tpu.memory_space<vmem>>, vector<1x256xf32>
    tpu.vector_store %arg1[%c0_1, %c0_2], %1 {strides = array<i32>} : memref<1x256xf32, #tpu.memory_space<vmem>>, vector<1x256xf32>,
    return
  }
}

</mosaic_0001>

<llo_original>
// kernel: tpu_custom_call.1
$region0: #{tpu_custom_call.1}
  #allocation0 [shape = 'u32[]', space=smem, size = 0x4, offset = 0x4, fixed_abs, tag = 'smem constant byte address 0x4 - core index']
  #allocation1 [shape = 'u32[144,128]{1,0:T(1,128)}', space=vmem, size = 0x12000, scoped, tag = 'internal scratch']
  %s0 = inlined_call_operand.hbm [shape: f32[1,256], index: 0, kind: input, shape index: {}]
  %s1 = inlined_call_operand.hbm [shape: f32[1,256], index: 1, kind: output, shape index: {}]
  %s2 = sld [smem:[#allocation0]]
  $region18: #{tpu_custom_call.1} parent=0
    _
  %s4 = ssub.s32 1, %s2
  %s5 = scalar_select 0, %s4, %s2
  $region1: #{tpu_custom_call.1} parent=0
    #allocation2 [shape = 'u8[1024]{0}', space=vmem, size = 0x400, scoped, tag = 'input window, operand 0, single buffered']
    #allocation3 [shape = 's32[1]{0}', space=sflag, size = 0x4, scoped, tag = 'scoped memory for tpu_custom_call.1']
    #allocation4 [shape = 's32[1]{0}', space=sflag, size = 0x4, scoped, tag = 'scoped memory for tpu_custom_call.1']
    #allocation5 [shape = 'u8[1024]{0}', space=vmem, size = 0x400, scoped, tag = 'output window, operand 0, single buffered']
    %6 = vsyncpa [#allocation3], 0
    %7 = vsyncpa [#allocation4], 0
    // Predicated region
    $region2: #{tpu_custom_call.1} parent=1 // pred_check
      _
    $region3: #{tpu_custom_call.1} parent=1 // pred_check_branch
      %9 = sbr.rel (0) target = $region5
    $region4: #{tpu_custom_call.1} parent=1 // pred_region
      %s11 = ssub.s32 32, 32
      %12 = vsyncadd [#allocation3], %s11
      %s14 = sshll.u32 [#allocation2], 4
      %s15 = int_to_ptr.vmem [resolvable:$true] %s14
      %17 = dma.hbm_to_vmem [thread:$0]  %s0, 32, %s15, [#allocation3]
    $region5: #{tpu_custom_call.1} parent=1 // pred_fallthru
      _
    // Predicated region
    $region6: #{tpu_custom_call.1} parent=1 // pred_check
      _
    $region7: #{tpu_custom_call.1} parent=1 // pred_check_branch
      %19 = sbr.rel (0) target = $region9
    $region8: #{tpu_custom_call.1} parent=1 // pred_region
      %20 = dma.done [#allocation3], 32
    $region9: #{tpu_custom_call.1} parent=1 // pred_fallthru
      _
    %v21 = vld [vmem:[#allocation2] sm:$0x3]
    %v23 = vlaneseq
    %v24 = vshrl.u32 %v23, 7
    %v25 = vsub.s32 0, %v24
    %v26 = vrot.slane %v21, %v25
    %v27 = vlaneseq
    %v28 = vshrl.u32 %v27, 7
    %v29 = vsub.s32 1, %v28
    %v30 = vrot.slane %v21, %v29
    %33 = vrot.lane.b32.xlu0 %v26, 3
    %v34 = vpop.permute.xlu0 %33
    %35 = vrot.lane.b32.xlu0 %v30, 3
    %v36 = vpop.permute.xlu0 %35
    %v37 = vlaneseq
    %v38 = vand.u32 %v37, 127
    %vm39 = vcmp.lt.s32.totalorder %v38, 3
    %v40 = vsel %vm39, %v34, %v36
    %v41 = vsel %vm39, %v36, %v34
    %v44 = vcombine.low %v41, %v40
    %v46 = vunpack.c.l.s4 1966171168
    %v47 = vunpack.c.0.s8 %v46
    %v48 = vlaneseq
    %v49 = vshrl.u32 %v48, 7
    %v50 = vsub.s32 %v47, %v49
    %v51 = vrot.slane %v44, %v50
    %v53 = vunpack.c.l.s4 1966171168
    %v54 = vunpack.c.0.s8 %v53
    %v55 = vlaneseq
    %v56 = vshrl.u32 %v55, 7
    %v57 = vsub.s32 %v54, %v56
    %v58 = vrot.slane %v51, %v57
    %v60 = vlaneseq
    %vm61 = vcmp.ge.s32.totalorder %v60, 0
    %vm62 = vcmp.lt.s32.totalorder %v60, 256
    %vm63 = vmand %vm61, %vm62
    %64 = vst.msk [vmem:[#allocation5] sm:$0x3] %vm63, %v58
    // Predicated region
    $region10: #{tpu_custom_call.1} parent=1 // pred_check
      _
    $region11: #{tpu_custom_call.1} parent=1 // pred_check_branch
      %66 = sbr.rel (0) target = $region13
    $region12: #{tpu_custom_call.1} parent=1 // pred_region
      %s68 = ssub.s32 32, 32
      %69 = vsyncadd [#allocation4], %s68
      %s71 = sshll.u32 [#allocation5], 4
      %s72 = int_to_ptr.vmem [resolvable:$true] %s71
      %74 = dma.vmem_to_hbm [thread:$0]  %s72, 32, %s1, [#allocation4]
    $region13: #{tpu_custom_call.1} parent=1 // pred_fallthru
      _
    // Predicated region
    $region14: #{tpu_custom_call.1} parent=1 // pred_check
      _
    $region15: #{tpu_custom_call.1} parent=1 // pred_check_branch
      %76 = sbr.rel (0) target = $region17
    $region16: #{tpu_custom_call.1} parent=1 // pred_region
      %77 = dma.done [#allocation4], 32
    $region17: #{tpu_custom_call.1} parent=1 // pred_fallthru
      _
    %78 = vsyncpa [#allocation3], 1
    %79 = vsyncpa [#allocation4], 1

</llo_original>
